<compile_context>
chip_gen: v6e
topology: v6e:2x2x1
jax: 0.10.0
libtpu: 0.0.40
codegen_flags: <defaults>
</compile_context>

<pallas_src>
import functools

import jax
import jax.numpy as jnp
from jax.experimental import pallas as pl
from jax.experimental.pallas import tpu as pltpu

_LANES = 128
_ACC_ROWS = 32          # 4 independent (8,128) vreg accumulation chains
_MIB = 1024 * 1024


def _sublane_multiple(dtype):
    """Minimum sublane tile multiple for a dtype (f32->8, bf16->16, int8->32)."""
    return max(8, 32 // jnp.dtype(dtype).itemsize)


def _round_up(x, m):
    return ((x + m - 1) // m) * m


def _tpu_vmem_and_cores():
    """(physical VMEM bytes, TensorCores per chip) with conservative fallbacks."""
    vmem_bytes = 64 * _MIB   # safe lower bound (v7x)
    cores = 1
    try:
        info = pltpu.get_tpu_info()
        for attr in ("vmem_capacity_bytes", "vmem_bytes", "vmem_size_bytes"):
            v = getattr(info, attr, None)
            if v:
                vmem_bytes = int(v)
                break
        for attr in ("num_cores", "tensorcores_per_chip", "core_count",
                     "num_tensorcores"):
            v = getattr(info, attr, None)
            if v:
                cores = int(v)
                break
    except Exception:
        pass   # not on TPU / query unavailable: keep conservative defaults
    return vmem_bytes, max(1, cores)


def _accumulate_sq(acc_ref, vals):
    """Fold sum(vals**2) into a (32,128) f32 VMEM accumulator (pure VALU).

    No cross-lane/sublane reduction here; the 32-row accumulator keeps four
    independent (8,128) vreg add chains in flight. The single cross-lane
    reduce is deferred to the JAX epilogue.
    """
    sq = vals * vals
    r = sq.shape[0]
    full = (r // _ACC_ROWS) * _ACC_ROWS
    if full:
        acc_ref[...] += sq[:full].reshape(-1, _ACC_ROWS, _LANES).sum(axis=0)
    mid = ((r - full) // 8) * 8
    if mid:
        acc_ref[0:mid, :] += sq[full:full + mid]
    rem = r - full - mid
    if rem:
        acc_ref[0:rem, :] += sq[full + mid:]


def _fold_stream(acc_ref, vals, global_tile, n_tiles, tile_rows, valid_rows,
                 ragged):
    """Accumulate one tile; mask garbage rows only on the stream's last tile."""
    if ragged:
        @pl.when(global_tile == n_tiles - 1)
        def _last_tile():
            row = jax.lax.broadcasted_iota(jnp.int32, vals.shape, 0)
            keep = (global_tile * tile_rows + row) < valid_rows
            _accumulate_sq(acc_ref, jnp.where(keep, vals, 0.0))

        @pl.when(global_tile < n_tiles - 1)
        def _full_tile():
            _accumulate_sq(acc_ref, vals)
    else:
        _accumulate_sq(acc_ref, vals)


def _weight_decay_kernel(out_ref, tgt_ref, w_ref, parts_ref,
                         acc_act_ref, acc_w_ref, *,
                         n_act_tiles, n_w_tiles,
                         act_steps_per_split, w_steps_per_split,
                         tr_act, tr_w, act_rows, w_rows,
                         mask_act, mask_w):
    c = pl.program_id(0)            # TensorCore split ("parallel")
    i = pl.program_id(1)            # streaming / reduction step ("arbitrary")
    n_steps = pl.num_programs(1)
    g_act = c * act_steps_per_split + i     # global tile index, act streams
    g_w = c * w_steps_per_split + i         # global tile index, weight stream

    @pl.when(i == 0)
    def _init():
        acc_act_ref[...] = jnp.zeros_like(acc_act_ref)
        acc_w_ref[...] = jnp.zeros_like(acc_w_ref)

    # --- MSE partial: sum((out - tgt)^2) over this split's activation tile ---
    @pl.when(jnp.logical_and(i < act_steps_per_split, g_act < n_act_tiles))
    def _acc_activations():
        d = out_ref[...].astype(jnp.float32) - tgt_ref[...].astype(jnp.float32)
        _fold_stream(acc_act_ref, d, g_act, n_act_tiles, tr_act, act_rows,
                     mask_act)

    # --- ||w||^2 partial: sum(w^2) over this split's weight tile -------------
    @pl.when(jnp.logical_and(i < w_steps_per_split, g_w < n_w_tiles))
    def _acc_weights():
        w = w_ref[...].astype(jnp.float32)
        _fold_stream(acc_w_ref, w, g_w, n_w_tiles, tr_w, w_rows, mask_w)

    # --- per-split epilogue: dump raw accumulators; combine happens in JAX ---
    @pl.when(i == n_steps - 1)
    def _finalize():
        parts_ref[0, 0] = acc_act_ref[...]
        parts_ref[0, 1] = acc_w_ref[...]


def _lane_dense_2d(flat):
    """1-D array -> lane-dense (rows, 128) slab.

    Free (no copy) when len % 128 == 0; otherwise the tail is zero-padded
    (zeros contribute nothing to either sum of squares).
    """
    n = int(flat.shape[0])
    pad = (-n) % _LANES
    if pad:
        flat = jnp.pad(flat, (0, pad))
    return flat.reshape(-1, _LANES), n


def weight_decay_loss(output, target, weight_vector, alpha=0.0005,
                      num_splits=None, working_set_bytes=None):
    """output, target: same shape; weight_vector: 1-D concat of ndim>1 params."""
    assert output.shape == target.shape

    out2d, n_elems = _lane_dense_2d(output.reshape(-1))
    tgt2d, _ = _lane_dense_2d(target.reshape(-1))
    w2d, _ = _lane_dense_2d(weight_vector.reshape(-1))

    act_rows = int(out2d.shape[0])
    w_rows = int(w2d.shape[0])

    vmem_bytes, n_cores = _tpu_vmem_and_cores()
    if num_splits is None:
        num_splits = min(2, n_cores)          # one slice per TensorCore (v7x: 2)
    num_splits = max(1, int(num_splits))

    # Generation-aware working-set cap for the double-buffered input blocks.
    if working_set_bytes is None:
        working_set_bytes = min(vmem_bytes // 4, 32 * _MIB)
    working_set_bytes = max(int(working_set_bytes), 8 * 1024)
    vmem_limit = min(vmem_bytes * 3 // 4, working_set_bytes * 3)
    vmem_limit = max(int(vmem_limit), 32 * _MIB)

    # Dtype-aware sublane multiples for the (sub, 128) block tiling constraint.
    sub_act = max(_sublane_multiple(output.dtype), _sublane_multiple(target.dtype))
    sub_w = _sublane_multiple(weight_vector.dtype)

    # --- balance per-stream tile heights so every step streams every input ---
    act_row_bytes = _LANES * (jnp.dtype(output.dtype).itemsize
                              + jnp.dtype(target.dtype).itemsize)
    w_row_bytes = _LANES * jnp.dtype(weight_vector.dtype).itemsize
    act_rows_split = pl.cdiv(act_rows, num_splits)
    w_rows_split = pl.cdiv(w_rows, num_splits)
    split_bytes = act_rows_split * act_row_bytes + w_rows_split * w_row_bytes
    n_steps_target = max(1, pl.cdiv(2 * split_bytes, working_set_bytes))

    def _tile_rows(rows_split, rows_total, sub):
        tr = _round_up(pl.cdiv(max(rows_split, 1), n_steps_target), sub)
        # Block equal to the full dim is allowed even when not a sub multiple.
        return rows_total if tr >= rows_total else tr

    tr_act = _tile_rows(act_rows_split, act_rows, sub_act)
    tr_w = _tile_rows(w_rows_split, w_rows, sub_w)

    n_act_tiles = pl.cdiv(act_rows, tr_act)
    n_w_tiles = pl.cdiv(w_rows, tr_w)
    act_steps_per_split = pl.cdiv(n_act_tiles, num_splits)
    w_steps_per_split = pl.cdiv(n_w_tiles, num_splits)
    n_steps = max(act_steps_per_split, w_steps_per_split)

    # Masking is only required when the last global tile of a stream is ragged.
    mask_act = (act_rows % tr_act) != 0
    mask_w = (w_rows % tr_w) != 0

    def act_map(c, i):
        j = jnp.minimum(i, act_steps_per_split - 1)   # freeze DMA once done
        return (jnp.minimum(c * act_steps_per_split + j, n_act_tiles - 1), 0)

    def w_map(c, i):
        j = jnp.minimum(i, w_steps_per_split - 1)
        return (jnp.minimum(c * w_steps_per_split + j, n_w_tiles - 1), 0)

    kernel = functools.partial(
        _weight_decay_kernel,
        n_act_tiles=n_act_tiles, n_w_tiles=n_w_tiles,
        act_steps_per_split=act_steps_per_split,
        w_steps_per_split=w_steps_per_split,
        tr_act=tr_act, tr_w=tr_w,
        act_rows=act_rows, w_rows=w_rows,
        mask_act=mask_act, mask_w=mask_w,
    )

    parts = pl.pallas_call(
        kernel,
        out_shape=jax.ShapeDtypeStruct((num_splits, 2, _ACC_ROWS, _LANES),
                                       jnp.float32),
        grid=(num_splits, n_steps),
        in_specs=[
            pl.BlockSpec((tr_act, _LANES), act_map),
            pl.BlockSpec((tr_act, _LANES), act_map),
            pl.BlockSpec((tr_w, _LANES), w_map),
        ],
        out_specs=pl.BlockSpec((1, 2, _ACC_ROWS, _LANES),
                               lambda c, i: (c, 0, 0, 0)),
        scratch_shapes=[
            pltpu.VMEM((_ACC_ROWS, _LANES), jnp.float32),  # sum((out-tgt)^2)
            pltpu.VMEM((_ACC_ROWS, _LANES), jnp.float32),  # sum(w^2)
        ],
        compiler_params=pltpu.CompilerParams(
            dimension_semantics=("parallel", "arbitrary"),
            vmem_limit_bytes=int(vmem_limit),
        ),
    )(out2d, tgt2d, w2d)

    # Tiny JAX epilogue: merge per-TensorCore partials, single cross-lane
    # reduce, 1/N scale, sqrt, alpha-combine.
    sse = jnp.sum(parts[:, 0])
    ssw = jnp.sum(parts[:, 1])
    return sse / jnp.float32(n_elems) + jnp.float32(alpha) * jnp.sqrt(ssw)


def make_network_weight_vector(key):
    """ndim>1 params of a small MLP: Linear(16->128), Linear(128->32), Linear(32->8).

    Only the weight matrices go into the vector (biases skipped), mirroring
    WeightDecay.vectorize_parameters.  Total length 2048+4096+256 = 6400.
    """
    k1, k2, k3 = jax.random.split(key, 3)
    w1 = jax.random.normal(k1, (128, 16), jnp.float32) * 0.1   # [out, in] like torch
    w2 = jax.random.normal(k2, (32, 128), jnp.float32) * 0.1
    w3 = jax.random.normal(k3, (8, 32), jnp.float32) * 0.1
    return jnp.concatenate([w1.reshape(-1), w2.reshape(-1), w3.reshape(-1)], axis=-1)


if __name__ == "__main__":
    key = jax.random.PRNGKey(0)
    k_w, k_out, k_tgt = jax.random.split(key, 3)

    weight_vector = make_network_weight_vector(k_w)            # (6400,) -> (50, 128)
    output = jax.random.normal(k_out, (2, 8), jnp.float32)     # batch=2, features=8
    target = jax.random.normal(k_tgt, (2, 8), jnp.float32)
    alpha = 0.0005

    # Pure-JAX reference: MSE(mean) + alpha * ||w||_2.
    ref = jnp.mean((output - target) ** 2) + alpha * jnp.linalg.norm(weight_vector)

    # 1) Production-style auto tiling (everything fits in one grid step here).
    res_auto = jax.block_until_ready(
        weight_decay_loss(output, target, weight_vector, alpha=alpha))
    assert jnp.allclose(res_auto, ref, rtol=1e-5, atol=1e-6), (res_auto, ref)

    # 2) Tiny working-set override to exercise the multi-step reduction grid,
    #    accumulator init/finalize, frozen index_maps after a stream finishes,
    #    pl.when guards and last-tile-only ragged masking.
    res_tiled = jax.block_until_ready(
        weight_decay_loss(output, target, weight_vector, alpha=alpha,
                          working_set_bytes=8 * 1024))
    assert jnp.allclose(res_tiled, ref, rtol=1e-5, atol=1e-6), (res_tiled, ref)

    # 3) Forced 2-way core split (v7x path); correct on any generation since
    #    extra splits just run as additional "parallel" outer iterations.
    res_split = jax.block_until_ready(
        weight_decay_loss(output, target, weight_vector, alpha=alpha,
                          num_splits=2, working_set_bytes=8 * 1024))
    assert jnp.allclose(res_split, ref, rtol=1e-5, atol=1e-6), (res_split, ref)

    print("KERNEL_OK")
</pallas_src>

<mosaic_0001>
module attributes {stable_mosaic.version = 11 : i64} {
  func.func @_weight_decay_kernel(%arg0: i32, %arg1: i32, %arg2: memref<1x128xf32, #tpu.memory_space<vmem>>, %arg3: memref<1x128xf32, #tpu.memory_space<vmem>>, %arg4: memref<50x128xf32, #tpu.memory_space<vmem>>, %arg5: memref<1x2x32x128xf32, #tpu.memory_space<vmem>>, %arg6: memref<32x128xf32, #tpu.memory_space<vmem>>, %arg7: memref<32x128xf32, #tpu.memory_space<vmem>>) attributes {dimension_semantics = [#tpu.dimension_semantics<parallel>, #tpu.dimension_semantics<arbitrary>], iteration_bounds = array<i64: 1, 1>, scalar_prefetch = 0 : i64, scratch_operands = 2 : i64, tpu.core_type = #tpu.core_type<tc>, window_params = [{transform_indices = @transform_0, window_bounds = array<i64: 1, 128>}, {transform_indices = @transform_1, window_bounds = array<i64: 1, 128>}, {transform_indices = @transform_2, window_bounds = array<i64: 50, 128>}, {transform_indices = @transform_3, window_bounds = array<i64: 1, 2, 32, 128>}]} {
    %c1_i32 = arith.constant 1 : i32
    %0 = arith.muli %arg0, %c1_i32 : i32
    %1 = arith.addi %0, %arg1 : i32
    %c1_i32_0 = arith.constant 1 : i32
    %2 = arith.muli %arg0, %c1_i32_0 : i32
    %3 = arith.addi %2, %arg1 : i32
    %c0_i32 = arith.constant 0 : i32
    %4 = arith.cmpi eq, %arg1, %c0_i32 : i32
    %5 = arith.extui %4 : i1 to i32
    %c0_i32_1 = arith.constant 0 : i32
    %6 = arith.cmpi ne, %5, %c0_i32_1 : i32
    scf.if %6 {
      %cst = arith.constant 0.000000e+00 : f32
      %20 = vector.broadcast %cst : f32 to vector<32x128xf32>
      %c0 = arith.constant 0 : index
      %c0_10 = arith.constant 0 : index
      %21 = vector.load %arg6[%c0, %c0_10] : memref<32x128xf32, #tpu.memory_space<vmem>>, vector<32x128xf32>
      tpu.vector_store %arg6[%c0, %c0_10], %20 {strides = array<i32>} : memref<32x128xf32, #tpu.memory_space<vmem>>, vector<32x128xf32>,
      %cst_11 = arith.constant 0.000000e+00 : f32
      %22 = vector.broadcast %cst_11 : f32 to vector<32x128xf32>
      %c0_12 = arith.constant 0 : index
      %c0_13 = arith.constant 0 : index
      %23 = vector.load %arg7[%c0_12, %c0_13] : memref<32x128xf32, #tpu.memory_space<vmem>>, vector<32x128xf32>
      tpu.vector_store %arg7[%c0_12, %c0_13], %22 {strides = array<i32>} : memref<32x128xf32, #tpu.memory_space<vmem>>, vector<32x128xf32>,
    } else {
    }
    %c1_i32_2 = arith.constant 1 : i32
    %7 = arith.cmpi slt, %arg1, %c1_i32_2 : i32
    %c1_i32_3 = arith.constant 1 : i32
    %8 = arith.cmpi slt, %1, %c1_i32_3 : i32
    %9 = arith.andi %7, %8 : i1
    %10 = arith.extui %9 : i1 to i32
    %c0_i32_4 = arith.constant 0 : i32
    %11 = arith.cmpi ne, %10, %c0_i32_4 : i32
    scf.if %11 {
      %c0 = arith.constant 0 : index
      %c0_10 = arith.constant 0 : index
      %20 = vector.load %arg2[%c0, %c0_10] : memref<1x128xf32, #tpu.memory_space<vmem>>, vector<1x128xf32>
      %c0_11 = arith.constant 0 : index
      %c0_12 = arith.constant 0 : index
      %21 = vector.load %arg3[%c0_11, %c0_12] : memref<1x128xf32, #tpu.memory_space<vmem>>, vector<1x128xf32>
      %22 = arith.subf %20, %21 : vector<1x128xf32>
      %23 = arith.mulf %22, %22 : vector<1x128xf32>
      %c0_13 = arith.constant 0 : index
      %c0_14 = arith.constant 0 : index
      %24 = vector.load %arg6[%c0_13, %c0_14] : memref<32x128xf32, #tpu.memory_space<vmem>>, vector<1x128xf32>
      %25 = arith.addf %24, %23 : vector<1x128xf32>
      %c0_15 = arith.constant 0 : index
      %c0_16 = arith.constant 0 : index
      %26 = vector.load %arg6[%c0_15, %c0_16] : memref<32x128xf32, #tpu.memory_space<vmem>>, vector<1x128xf32>
      tpu.vector_store %arg6[%c0_15, %c0_16], %25 {strides = array<i32>} : memref<32x128xf32, #tpu.memory_space<vmem>>, vector<1x128xf32>,
    } else {
    }
    %c1_i32_5 = arith.constant 1 : i32
    %12 = arith.cmpi slt, %arg1, %c1_i32_5 : i32
    %c1_i32_6 = arith.constant 1 : i32
    %13 = arith.cmpi slt, %3, %c1_i32_6 : i32
    %14 = arith.andi %12, %13 : i1
    %15 = arith.extui %14 : i1 to i32
    %c0_i32_7 = arith.constant 0 : i32
    %16 = arith.cmpi ne, %15, %c0_i32_7 : i32
    scf.if %16 {
      %c0 = arith.constant 0 : index
      %c0_10 = arith.constant 0 : index
      %20 = vector.load %arg4[%c0, %c0_10] : memref<50x128xf32, #tpu.memory_space<vmem>>, vector<50x128xf32>
      %21 = arith.mulf %20, %20 : vector<50x128xf32>
      %c0_11 = arith.constant 0 : index
      %c0_12 = arith.constant 0 : index
      %22 = vector.load %arg7[%c0_11, %c0_12] : memref<32x128xf32, #tpu.memory_space<vmem>>, vector<32x128xf32>
      %23 = vector.extract_strided_slice %21 {offsets = [0, 0], sizes = [32, 128], strides = [1, 1]} : vector<50x128xf32> to vector<32x128xf32>
      %24 = vector.shape_cast %23 : vector<32x128xf32> to vector<1x32x128xf32>
      %cst = arith.constant dense<0.000000e+00> : vector<32x128xf32>
      %25 = vector.multi_reduction <add>, %24, %cst [0] : vector<1x32x128xf32> to vector<32x128xf32>
      %26 = arith.addf %22, %25 : vector<32x128xf32>
      %c0_13 = arith.constant 0 : index
      %c0_14 = arith.constant 0 : index
      %27 = vector.load %arg7[%c0_13, %c0_14] : memref<32x128xf32, #tpu.memory_space<vmem>>, vector<32x128xf32>
      tpu.vector_store %arg7[%c0_13, %c0_14], %26 {strides = array<i32>} : memref<32x128xf32, #tpu.memory_space<vmem>>, vector<32x128xf32>,
      %c0_15 = arith.constant 0 : index
      %c0_16 = arith.constant 0 : index
      %28 = vector.load %arg7[%c0_15, %c0_16] : memref<32x128xf32, #tpu.memory_space<vmem>>, vector<16x128xf32>
      %29 = vector.extract_strided_slice %21 {offsets = [32, 0], sizes = [16, 128], strides = [1, 1]} : vector<50x128xf32> to vector<16x128xf32>
      %30 = arith.addf %28, %29 : vector<16x128xf32>
      %c0_17 = arith.constant 0 : index
      %c0_18 = arith.constant 0 : index
      %31 = vector.load %arg7[%c0_17, %c0_18] : memref<32x128xf32, #tpu.memory_space<vmem>>, vector<16x128xf32>
      tpu.vector_store %arg7[%c0_17, %c0_18], %30 {strides = array<i32>} : memref<32x128xf32, #tpu.memory_space<vmem>>, vector<16x128xf32>,
      %c0_19 = arith.constant 0 : index
      %c0_20 = arith.constant 0 : index
      %32 = vector.load %arg7[%c0_19, %c0_20] : memref<32x128xf32, #tpu.memory_space<vmem>>, vector<2x128xf32>
      %33 = vector.extract_strided_slice %21 {offsets = [48, 0], sizes = [2, 128], strides = [1, 1]} : vector<50x128xf32> to vector<2x128xf32>
      %34 = arith.addf %32, %33 : vector<2x128xf32>
      %c0_21 = arith.constant 0 : index
      %c0_22 = arith.constant 0 : index
      %35 = vector.load %arg7[%c0_21, %c0_22] : memref<32x128xf32, #tpu.memory_space<vmem>>, vector<2x128xf32>
      tpu.vector_store %arg7[%c0_21, %c0_22], %34 {strides = array<i32>} : memref<32x128xf32, #tpu.memory_space<vmem>>, vector<2x128xf32>,
    } else {
    }
    %c0_i32_8 = arith.constant 0 : i32
    %17 = arith.cmpi eq, %arg1, %c0_i32_8 : i32
    %18 = arith.extui %17 : i1 to i32
    %c0_i32_9 = arith.constant 0 : i32
    %19 = arith.cmpi ne, %18, %c0_i32_9 : i32
    scf.if %19 {
      %c0 = arith.constant 0 : index
      %c0_10 = arith.constant 0 : index
      %20 = vector.load %arg6[%c0, %c0_10] : memref<32x128xf32, #tpu.memory_space<vmem>>, vector<32x128xf32>
      %c0_11 = arith.constant 0 : index
      %c0_12 = arith.constant 0 : index
      %c0_13 = arith.constant 0 : index
      %c0_14 = arith.constant 0 : index
      %21 = vector.load %arg5[%c0_11, %c0_12, %c0_13, %c0_14] : memref<1x2x32x128xf32, #tpu.memory_space<vmem>>, vector<1x1x32x128xf32>
      %22 = vector.shape_cast %21 : vector<1x1x32x128xf32> to vector<32x128xf32>
      %23 = vector.shape_cast %20 : vector<32x128xf32> to vector<1x1x32x128xf32>
      tpu.vector_store %arg5[%c0_11, %c0_12, %c0_13, %c0_14], %23 {strides = array<i32>} : memref<1x2x32x128xf32, #tpu.memory_space<vmem>>, vector<1x1x32x128xf32>,
      %c0_15 = arith.constant 0 : index
      %c0_16 = arith.constant 0 : index
      %24 = vector.load %arg7[%c0_15, %c0_16] : memref<32x128xf32, #tpu.memory_space<vmem>>, vector<32x128xf32>
      %c0_17 = arith.constant 0 : index
      %c1 = arith.constant 1 : index
      %c0_18 = arith.constant 0 : index
      %c0_19 = arith.constant 0 : index
      %25 = vector.load %arg5[%c0_17, %c1, %c0_18, %c0_19] : memref<1x2x32x128xf32, #tpu.memory_space<vmem>>, vector<1x1x32x128xf32>
      %26 = vector.shape_cast %25 : vector<1x1x32x128xf32> to vector<32x128xf32>
      %27 = vector.shape_cast %24 : vector<32x128xf32> to vector<1x1x32x128xf32>
      tpu.vector_store %arg5[%c0_17, %c1, %c0_18, %c0_19], %27 {strides = array<i32>} : memref<1x2x32x128xf32, #tpu.memory_space<vmem>>, vector<1x1x32x128xf32>,
    } else {
    }
    return
  }
  func.func @transform_0(%arg0: i32, %arg1: i32) -> (i32, i32) {
    %c0_i32 = arith.constant 0 : i32
    %0 = arith.minsi %arg1, %c0_i32 : i32
    %c1_i32 = arith.constant 1 : i32
    %1 = arith.muli %arg0, %c1_i32 : i32
    %2 = arith.addi %1, %0 : i32
    %c0_i32_0 = arith.constant 0 : i32
    %3 = arith.minsi %2, %c0_i32_0 : i32
    %c0_i32_1 = arith.constant 0 : i32
    %c0_i32_2 = arith.constant 0 : i32
    return %3, %c0_i32_1 : i32, i32
  }
  func.func @transform_1(%arg0: i32, %arg1: i32) -> (i32, i32) {
    %c0_i32 = arith.constant 0 : i32
    %0 = arith.minsi %arg1, %c0_i32 : i32
    %c1_i32 = arith.constant 1 : i32
    %1 = arith.muli %arg0, %c1_i32 : i32
    %2 = arith.addi %1, %0 : i32
    %c0_i32_0 = arith.constant 0 : i32
    %3 = arith.minsi %2, %c0_i32_0 : i32
    %c0_i32_1 = arith.constant 0 : i32
    %c0_i32_2 = arith.constant 0 : i32
    return %3, %c0_i32_1 : i32, i32
  }
  func.func @transform_2(%arg0: i32, %arg1: i32) -> (i32, i32) {
    %c0_i32 = arith.constant 0 : i32
    %0 = arith.minsi %arg1, %c0_i32 : i32
    %c1_i32 = arith.constant 1 : i32
    %1 = arith.muli %arg0, %c1_i32 : i32
    %2 = arith.addi %1, %0 : i32
    %c0_i32_0 = arith.constant 0 : i32
    %3 = arith.minsi %2, %c0_i32_0 : i32
    %c0_i32_1 = arith.constant 0 : i32
    %c0_i32_2 = arith.constant 0 : i32
    return %3, %c0_i32_1 : i32, i32
  }
  func.func @transform_3(%arg0: i32, %arg1: i32) -> (i32, i32, i32, i32) {
    %c0_i32 = arith.constant 0 : i32
    %c0_i32_0 = arith.constant 0 : i32
    %c0_i32_1 = arith.constant 0 : i32
    %c0_i32_2 = arith.constant 0 : i32
    return %arg0, %c0_i32, %c0_i32_0, %c0_i32_1 : i32, i32, i32, i32
  }
}

</mosaic_0001>

<llo_original>
// kernel: tpu_custom_call.1
$region0: #{tpu_custom_call.1}
  #allocation0 [shape = 'u32[]', space=smem, size = 0x4, offset = 0x4, fixed_abs, tag = 'smem constant byte address 0x4 - core index']
  #allocation1 [shape = 'u32[144,128]{1,0:T(1,128)}', space=vmem, size = 0x12000, scoped, tag = 'internal scratch']
  #allocation2 [shape = 'f32[32,128]{1,0:T(8,128)}', space=vmem, size = 0x4000, scoped, tag = 'scratch operand']
  #allocation3 [shape = 'f32[32,128]{1,0:T(8,128)}', space=vmem, size = 0x4000, scoped, tag = 'scratch operand']
  %s0 = inlined_call_operand.hbm [shape: f32[1,128], index: 0, kind: input, shape index: {}]
  %s1 = inlined_call_operand.vmem [shape: f32[1,128], index: 1, kind: input, shape index: {}]
  %s2 = inlined_call_operand.hbm [shape: f32[50,128], index: 2, kind: input, shape index: {}]
  %s3 = inlined_call_operand.hbm [shape: f32[1,2,32,128], index: 3, kind: output, shape index: {}]
  %s4 = sld [smem:[#allocation0]]
  $region42: #{tpu_custom_call.1} parent=0
    _
  %s6 = ssub.s32 1, %s4
  %s7 = scalar_select 0, %s6, %s4
  $region1: #{tpu_custom_call.1} parent=0
    #allocation4 [shape = 'u8[512]{0}', space=vmem, size = 0x400, scoped, tag = 'input window, operand 0, single buffered']
    #allocation5 [shape = 's32[1]{0}', space=sflag, size = 0x4, scoped, tag = 'scoped memory for tpu_custom_call.1']
    #allocation6 [shape = 's32[1]{0}', space=sflag, size = 0x4, scoped, tag = 'scoped memory for tpu_custom_call.1']
    #allocation7 [shape = 'u8[28672]{0}', space=vmem, size = 0x7000, scoped, tag = 'input window, operand 2, single buffered']
    #allocation8 [shape = 's32[1]{0}', space=sflag, size = 0x4, scoped, tag = 'scoped memory for tpu_custom_call.1']
    #allocation9 [shape = 'u8[32768]{0}', space=vmem, size = 0x8000, scoped, tag = 'output window, operand 0, single buffered']
    %8 = vsyncpa [#allocation5], 0
    %9 = vsyncpa [#allocation8], 0
    %10 = vsyncpa [#allocation6], 0
    // Predicated region
    $region2: #{tpu_custom_call.1} parent=1 // pred_check
      _
    $region3: #{tpu_custom_call.1} parent=1 // pred_check_branch
      %12 = sbr.rel (0) target = $region5
    $region4: #{tpu_custom_call.1} parent=1 // pred_region
      %s13 = sadd.s32 0, 0
      %p14 = scmp.lt.s32.totalorder %s13, 0
      %s15 = scalar_select %p14, %s13, 0
      %s17 = ssub.s32 16, 16
      %18 = vsyncadd [#allocation5], %s17
      %s19 = smul.addr %s15, 16
      %s20 = scalar_lea.hbm %s0, %s19
      %s22 = sshll.u32 [#allocation4], 4
      %s23 = int_to_ptr.vmem [resolvable:$true] %s22
      %25 = dma.hbm_to_vmem [thread:$0]  %s20, 16, %s23, [#allocation5]
    $region5: #{tpu_custom_call.1} parent=1 // pred_fallthru
      _
    // Predicated region
    $region6: #{tpu_custom_call.1} parent=1 // pred_check
      _
    $region7: #{tpu_custom_call.1} parent=1 // pred_check_branch
      %27 = sbr.rel (0) target = $region9
    $region8: #{tpu_custom_call.1} parent=1 // pred_region
      %s28 = sadd.s32 0, 0
      %p29 = scmp.lt.s32.totalorder %s28, 0
      %s30 = scalar_select %p29, %s28, 0
      %p31 = scmp.lt.s32.totalorder %s30, 0
      %s32 = scalar_select %p31, %s30, 0
      %s33 = scalar_lea.vmem %s1, %s32
      %s34 = sadd.s32 0, 0
      %p35 = scmp.lt.s32.totalorder %s34, 0
      %s36 = scalar_select %p35, %s34, 0
    $region9: #{tpu_custom_call.1} parent=1 // pred_fallthru
      _
    // Predicated region
    $region10: #{tpu_custom_call.1} parent=1 // pred_check
      _
    $region11: #{tpu_custom_call.1} parent=1 // pred_check_branch
      %38 = sbr.rel (0) target = $region13
    $region12: #{tpu_custom_call.1} parent=1 // pred_region
      %s39 = sadd.s32 0, 0
      %p40 = scmp.lt.s32.totalorder %s39, 0
      %s41 = scalar_select %p40, %s39, 0
      %s42 = smul.u32 7, %s41
      %s44 = ssub.s32 896, 896
      %45 = vsyncadd [#allocation8], %s44
      %s46 = smul.addr %s42, 128
      %s47 = scalar_lea.hbm %s2, %s46
      %s48 = sshll.u32 [#allocation7], 4
      %s49 = int_to_ptr.vmem [resolvable:$true] %s48
      %54 = dma.hbm_to_vmem [thread:$0]  %s47, 896, %s49, [#allocation8], 128, 128, 8
    $region13: #{tpu_custom_call.1} parent=1 // pred_fallthru
      _
    // Predicated region
    $region14: #{tpu_custom_call.1} parent=1 // pred_check
      _
    $region15: #{tpu_custom_call.1} parent=1 // pred_check_branch
      %56 = sbr.rel (0) target = $region17
    $region16: #{tpu_custom_call.1} parent=1 // pred_region
      %57 = dma.done [#allocation5], 16
    $region17: #{tpu_custom_call.1} parent=1 // pred_fallthru
      _
    // Predicated region
    $region18: #{tpu_custom_call.1} parent=1 // pred_check
      _
    $region19: #{tpu_custom_call.1} parent=1 // pred_check_branch
      %59 = sbr.rel (0) target = $region21
    $region20: #{tpu_custom_call.1} parent=1 // pred_region
      %60 = dma.done [#allocation8], 896
    $region21: #{tpu_custom_call.1} parent=1 // pred_fallthru
      _
    %s61 = sadd.s32 0, 0
    %p62 = scmp.lt.s32.totalorder %s61, 0
    %s63 = scalar_select %p62, %s61, 0
    %p64 = scmp.lt.s32.totalorder %s63, 0
    %s65 = scalar_select %p64, %s63, 0
    %s66 = scalar_lea.vmem %s1, %s65
    %s67 = sadd.s32 0, 0
    %p68 = scmp.lt.s32.totalorder %s67, 0
    %s69 = scalar_select %p68, %s67, 0
    %s70 = sadd.s32 0, 0
    %p71 = scmp.lt.s32.totalorder %s70, 0
    %s72 = scalar_select %p71, %s70, 0
    %p73 = scmp.lt.s32.totalorder %s72, 0
    %s74 = scalar_select %p73, %s72, 0
    %s75 = scalar_lea.vmem %s1, %s74
    %s76 = sadd.s32 0, 0
    %p77 = scmp.lt.s32.totalorder %s76, 0
    %s78 = scalar_select %p77, %s76, 0
    %s79 = sadd.s32 0, 0
    %p80 = scmp.lt.s32.totalorder %s79, 0
    %s81 = scalar_select %p80, %s79, 0
    %s82 = smul.u32 7, %s81
    %s83 = sadd.s32 0, 0
    %p84 = scmp.eq.s32.totalorder 0, 0
    // Predicated region
    $region22: #{tpu_custom_call.1} parent=1 // pred_check
      %p85 = pneg %p84
    $region23: #{tpu_custom_call.1} parent=1 // pred_check_branch
      %87 = sbr.rel (%p85) target = $region25
    $region24: #{tpu_custom_call.1} parent=1 // pred_region
      %88 = vst [vmem:[#allocation2] sm:$0xff] 0.0
      %89 = vst [vmem:[#allocation2 + $0x8] sm:$0xff] 0.0
      %90 = vst [vmem:[#allocation2 + $0x10] sm:$0xff] 0.0
      %91 = vst [vmem:[#allocation2 + $0x18] sm:$0xff] 0.0
      %92 = vst [vmem:[#allocation3] sm:$0xff] 0.0
      %93 = vst [vmem:[#allocation3 + $0x8] sm:$0xff] 0.0
      %94 = vst [vmem:[#allocation3 + $0x10] sm:$0xff] 0.0
      %95 = vst [vmem:[#allocation3 + $0x18] sm:$0xff] 0.0
    $region25: #{tpu_custom_call.1} parent=1 // pred_fallthru
      _
    %p96 = scmp.lt.s32.totalorder 0, 1
    %p97 = scmp.lt.s32.totalorder %s83, 1
    %p98 = pnand %p96, %p97
    %p99 = pneg %p98
    // Predicated region
    $region26: #{tpu_custom_call.1} parent=1 // pred_check
      _
    $region27: #{tpu_custom_call.1} parent=1 // pred_check_branch
      %101 = sbr.rel (%p98) target = $region29
    $region28: #{tpu_custom_call.1} parent=1 // pred_region
      %v102 = vld [vmem:[#allocation4] sm:$0x1]
      %v103 = vld [vmem:[%s75] sm:$0x1]
      %v104 = vsub.f32 %v102, %v103
      %v105 = vmul.f32 %v104, %v104
      %v106 = vld [vmem:[#allocation2] sm:$0x1]
      %v107 = vadd.f32 %v106, %v105
      %108 = vst [vmem:[#allocation2] sm:$0x1] %v107
      %v109 = vld [vmem:[#allocation7] sm:$0xff]
      %v110 = vld [vmem:[#allocation7 + $0x8] sm:$0xff]
      %v111 = vld [vmem:[#allocation7 + $0x10] sm:$0xff]
      %v112 = vld [vmem:[#allocation7 + $0x18] sm:$0xff]
      %v113 = vld [vmem:[#allocation7 + $0x20] sm:$0xff]
      %v114 = vld [vmem:[#allocation7 + $0x28] sm:$0xff]
      %v115 = vld [vmem:[#allocation7 + $0x30] sm:$0x3]
      %v116 = vmul.f32 %v109, %v109
      %v117 = vmul.f32 %v110, %v110
      %v118 = vmul.f32 %v111, %v111
      %v119 = vmul.f32 %v112, %v112
      %v120 = vmul.f32 %v113, %v113
      %v121 = vmul.f32 %v114, %v114
      %v122 = vmul.f32 %v115, %v115
      %v123 = vld [vmem:[#allocation3] sm:$0xff]
      %v124 = vld [vmem:[#allocation3 + $0x8] sm:$0xff]
      %v125 = vld [vmem:[#allocation3 + $0x10] sm:$0xff]
      %v126 = vld [vmem:[#allocation3 + $0x18] sm:$0xff]
      %v127 = vadd.f32 %v116, 0.0
      %v128 = vadd.f32 %v117, 0.0
      %v129 = vadd.f32 %v118, 0.0
      %v130 = vadd.f32 %v119, 0.0
      %v131 = vadd.f32 %v123, %v127
      %v132 = vadd.f32 %v124, %v128
      %v133 = vadd.f32 %v125, %v129
      %v134 = vadd.f32 %v126, %v130
      %135 = vst [vmem:[#allocation3] sm:$0xff] %v131
      %136 = vst [vmem:[#allocation3 + $0x8] sm:$0xff] %v132
      %137 = vst [vmem:[#allocation3 + $0x10] sm:$0xff] %v133
      %138 = vst [vmem:[#allocation3 + $0x18] sm:$0xff] %v134
      %v139 = vld [vmem:[#allocation3] sm:$0xff]
      %v140 = vld [vmem:[#allocation3 + $0x8] sm:$0xff]
      %v141 = vadd.f32 %v139, %v120
      %v142 = vadd.f32 %v140, %v121
      %143 = vst [vmem:[#allocation3] sm:$0xff] %v141
      %144 = vst [vmem:[#allocation3 + $0x8] sm:$0xff] %v142
      %v145 = vld [vmem:[#allocation3] sm:$0x3]
      %v146 = vadd.f32 %v145, %v122
      %147 = vst [vmem:[#allocation3] sm:$0x3] %v146
    $region29: #{tpu_custom_call.1} parent=1 // pred_fallthru
      _
    // Predicated region
    $region30: #{tpu_custom_call.1} parent=1 // pred_check
      %p148 = pneg %p84
    $region31: #{tpu_custom_call.1} parent=1 // pred_check_branch
      %150 = sbr.rel (%p148) target = $region33
    $region32: #{tpu_custom_call.1} parent=1 // pred_region
      %v151 = vld [vmem:[#allocation2] sm:$0xff]
      %v152 = vld [vmem:[#allocation2 + $0x8] sm:$0xff]
      %v153 = vld [vmem:[#allocation2 + $0x10] sm:$0xff]
      %v154 = vld [vmem:[#allocation2 + $0x18] sm:$0xff]
      %155 = vst [vmem:[#allocation9] sm:$0xff] %v151
      %156 = vst [vmem:[#allocation9 + $0x8] sm:$0xff] %v152
      %157 = vst [vmem:[#allocation9 + $0x10] sm:$0xff] %v153
      %158 = vst [vmem:[#allocation9 + $0x18] sm:$0xff] %v154
      %v159 = vld [vmem:[#allocation3] sm:$0xff]
      %v160 = vld [vmem:[#allocation3 + $0x8] sm:$0xff]
      %v161 = vld [vmem:[#allocation3 + $0x10] sm:$0xff]
      %v162 = vld [vmem:[#allocation3 + $0x18] sm:$0xff]
      %s163 = scalar_lea.vmem [#allocation9], 32
      %164 = vst [vmem:[%s163] sm:$0xff] %v159
      %165 = vst [vmem:[%s163 + $0x8] sm:$0xff] %v160
      %166 = vst [vmem:[%s163 + $0x10] sm:$0xff] %v161
      %167 = vst [vmem:[%s163 + $0x18] sm:$0xff] %v162
    $region33: #{tpu_custom_call.1} parent=1 // pred_fallthru
      _
    // Predicated region
    $region34: #{tpu_custom_call.1} parent=1 // pred_check
      _
    $region35: #{tpu_custom_call.1} parent=1 // pred_check_branch
      %169 = sbr.rel (0) target = $region37
    $region36: #{tpu_custom_call.1} parent=1 // pred_region
      %s171 = ssub.s32 1024, 1024
      %172 = vsyncadd [#allocation6], %s171
      %s173 = sshll.u32 [#allocation9], 4
      %s174 = int_to_ptr.vmem [resolvable:$true] %s173
      %179 = dma.vmem_to_hbm [thread:$0]  %s174, 1024, %s3, [#allocation6], 128, 128, 8
    $region37: #{tpu_custom_call.1} parent=1 // pred_fallthru
      _
    // Predicated region
    $region38: #{tpu_custom_call.1} parent=1 // pred_check
      _
    $region39: #{tpu_custom_call.1} parent=1 // pred_check_branch
      %181 = sbr.rel (0) target = $region41
    $region40: #{tpu_custom_call.1} parent=1 // pred_region
      %182 = dma.done [#allocation6], 1024
    $region41: #{tpu_custom_call.1} parent=1 // pred_fallthru
      _
    %183 = vsyncpa [#allocation5], 1
    %184 = vsyncpa [#allocation8], 1
    %185 = vsyncpa [#allocation6], 1

</llo_original>
